<compile_context>
chip_gen: v5e
topology: v5e:2x2
jax: 0.10.0
libtpu: 0.0.40
codegen_flags: <defaults>
</compile_context>

<pallas_src>
import functools

import jax
import jax.numpy as jnp
from jax.experimental import pallas as pl
from jax.experimental.pallas import tpu as pltpu

_LANES = 128      # lane width (last dim of a vreg tile)
_SUBLANES = 8     # sublane width (second-to-last dim of a vreg tile)


def _round_up(x, m):
    return (x + m - 1) // m * m


def _pick_tb(b_ceil: int) -> int:
    """Batch-tile rows. Large tiles amortize the ~0.35 us/grid-step overhead and keep HBM
    DMAs big (256-row tiles ~63% of HBM roofline vs ~85% at 512-1024 rows)."""
    tb = min(1024, b_ceil)
    # Give megacore (v7x, 2 TensorCores) at least two grid steps once the batch is big.
    if 512 <= b_ceil <= 2 * tb:
        tb = min(tb, _round_up(pl.cdiv(b_ceil, 2), 256))
    return max(_SUBLANES, min(tb, b_ceil))


def _pick_tk(k: int, k_max_tile: int = 1024) -> int:
    """K-tile size. Must divide K exactly (reduction axis) and be a multiple of 128 unless it
    is the whole axis. K <= 1024 (the demo's K=256) stays untiled."""
    if k <= k_max_tile or k % _LANES != 0:
        return k
    for d in range(k_max_tile // _LANES, 0, -1):
        if k % (d * _LANES) == 0:
            return d * _LANES
    return k


def _linear_kernel(x_ref, wt_ref, b_ref, o_ref, acc_ref, *, enable_sigmoid_out: bool):
    # x_ref:   (tb, tk)     flattened-input batch tile
    # wt_ref:  (tk, N_pad)  pre-transposed, lane-padded weight tile
    # b_ref:   (1, N_pad)   lane-padded bias
    # o_ref:   (tb, N_pad)  lane-dense output tile
    # acc_ref: (tb, N_pad)  f32 accumulator, resident across the K grid axis
    kj = pl.program_id(1)

    @pl.when(kj == 0)
    def _():
        acc_ref[...] = jnp.zeros_like(acc_ref)

    acc_ref[...] += jnp.dot(x_ref[...], wt_ref[...], preferred_element_type=jnp.float32)

    @pl.when(kj == pl.num_programs(1) - 1)
    def _():
        y = acc_ref[...] + b_ref[...].astype(jnp.float32)
        if enable_sigmoid_out:
            y = jax.nn.sigmoid(y)          # EUP exp/recip, f32 epilogue (v5e-safe)
        o_ref[...] = y.astype(o_ref.dtype)


def prepare_params(weight, bias, dtype=None):
    """One-time parameter prep (outside the per-call hot path).

    torch stores weight as (N, K) with y = x @ W^T + b.  Pre-transpose to (K, N) and zero-pad
    N up to exactly 128 lanes so every output store is unmasked and lane-dense.  Pass
    dtype=jnp.bfloat16 to halve streamed parameter bytes (keep f32 accumulation in-kernel).
    """
    n_out, k = weight.shape
    n_pad = _round_up(n_out, _LANES)
    dtype = weight.dtype if dtype is None else dtype
    wt_pad = jnp.zeros((k, n_pad), dtype=dtype).at[:, :n_out].set(weight.T.astype(dtype))
    b_pad = jnp.zeros((1, n_pad), dtype=dtype).at[0, :n_out].set(bias.astype(dtype))
    return wt_pad, b_pad


@functools.partial(
    jax.jit,
    static_argnames=("n_out", "enable_sigmoid_out", "tb", "tk", "return_padded", "out_dtype"))
def simple_linear_forward(x, wt_pad, b_pad, *, n_out, enable_sigmoid_out=False,
                          tb=None, tk=None, return_padded=False, out_dtype=None):
    """x: (B, seq, feat); wt_pad: (K, N_pad) pre-transposed; b_pad: (1, N_pad)."""
    b = x.shape[0]
    k, n_pad = wt_pad.shape
    out_dtype = jnp.float32 if out_dtype is None else out_dtype

    x_flat = x.reshape(b, k)                      # torch.nn.Flatten (row-major reshape)

    b_ceil = _round_up(b, _SUBLANES)
    tb = _pick_tb(b_ceil) if tb is None else _round_up(min(tb, b_ceil), _SUBLANES)
    tk = _pick_tk(k) if tk is None else tk
    assert k % tk == 0 and (tk == k or tk % _LANES == 0), (k, tk)

    nb = pl.cdiv(b, tb)        # partial last batch block handled by Pallas (no wrapper pad)
    nk = k // tk
    grid = (nb, nk)

    kernel = functools.partial(_linear_kernel, enable_sigmoid_out=enable_sigmoid_out)

    isz = lambda a: jnp.dtype(a.dtype).itemsize
    cost = pl.CostEstimate(
        flops=2 * b * k * n_pad + b * n_pad,
        transcendentals=b * n_pad if enable_sigmoid_out else 0,
        bytes_accessed=(b * k * isz(x_flat) + k * n_pad * isz(wt_pad)
                        + n_pad * isz(b_pad) + b * n_pad * jnp.dtype(out_dtype).itemsize),
    )

    out = pl.pallas_call(
        kernel,
        out_shape=jax.ShapeDtypeStruct((b, n_pad), out_dtype),
        grid=grid,
        in_specs=[
            pl.BlockSpec((tb, tk), lambda i, j: (i, j)),
            pl.BlockSpec((tk, n_pad), lambda i, j: (j, 0)),
            pl.BlockSpec((1, n_pad), lambda i, j: (0, 0)),
        ],
        out_specs=pl.BlockSpec((tb, n_pad), lambda i, j: (i, 0)),
        scratch_shapes=[pltpu.VMEM((tb, n_pad), jnp.float32)],
        compiler_params=pltpu.CompilerParams(
            dimension_semantics=("parallel", "arbitrary")),
        cost_estimate=cost,
    )(x_flat, wt_pad, b_pad)

    if return_padded:
        return out             # (B, 128) lane-dense buffer; consumer indexes columns [:n_out]
    return out[:, :n_out]      # for large B prefer return_padded=True (skips an HBM round-trip)


if __name__ == "__main__":
    # Small shapes consistent with the module: in_features=32, seq_length=8, out_features=7.
    B, SEQ, FEAT, OUT = 2, 8, 32, 7
    K = SEQ * FEAT

    key = jax.random.PRNGKey(0)
    kx, kw, kb, kx2 = jax.random.split(key, 4)

    x = jax.random.normal(kx, (B, SEQ, FEAT), dtype=jnp.float32)

    # Deterministic params mimicking torch.nn.Linear init: U(-1/sqrt(K), 1/sqrt(K)).
    bound = 1.0 / (K ** 0.5)
    weight = jax.random.uniform(kw, (OUT, K), minval=-bound, maxval=bound, dtype=jnp.float32)
    bias = jax.random.uniform(kb, (OUT,), minval=-bound, maxval=bound, dtype=jnp.float32)

    # One-time (init-time) parameter prep: transpose + lane-pad to 128.  Not in the hot path.
    wt_pad, b_pad = prepare_params(weight, bias)

    # Plain-JAX reference (exact f32 matmul).
    ref = jnp.dot(x.reshape(B, K), weight.T, precision=jax.lax.Precision.HIGHEST) + bias

    out = jax.block_until_ready(
        simple_linear_forward(x, wt_pad, b_pad, n_out=OUT, enable_sigmoid_out=False))
    assert out.shape == (B, OUT)
    assert jnp.allclose(out, ref, atol=1e-4, rtol=1e-4)

    # Sigmoid path.
    out_sig = jax.block_until_ready(
        simple_linear_forward(x, wt_pad, b_pad, n_out=OUT, enable_sigmoid_out=True))
    assert jnp.allclose(out_sig, jax.nn.sigmoid(ref), atol=1e-4, rtol=1e-4)

    # Exercise the multi-step grid paths: non-multiple-of-8 batch (partial last block, no
    # wrapper pad) and a tiled K axis driving the f32 accumulator across two K steps.
    B2 = 100
    x2 = jax.random.normal(kx2, (B2, SEQ, FEAT), dtype=jnp.float32)
    ref2 = jnp.dot(x2.reshape(B2, K), weight.T, precision=jax.lax.Precision.HIGHEST) + bias
    out2 = jax.block_until_ready(
        simple_linear_forward(x2, wt_pad, b_pad, n_out=OUT, tb=64, tk=128))
    assert out2.shape == (B2, OUT)
    assert jnp.allclose(out2, ref2, atol=1e-4, rtol=1e-4)

    print("KERNEL_OK")
</pallas_src>

<mosaic_0001>
module attributes {stable_mosaic.version = 11 : i64} {
  func.func @_linear_kernel(%arg0: i32, %arg1: i32, %arg2: memref<8x256xf32, #tpu.memory_space<vmem>>, %arg3: memref<256x128xf32, #tpu.memory_space<vmem>>, %arg4: memref<1x128xf32, #tpu.memory_space<vmem>>, %arg5: memref<8x128xf32, #tpu.memory_space<vmem>>, %arg6: memref<8x128xf32, #tpu.memory_space<vmem>>) attributes {dimension_semantics = [#tpu.dimension_semantics<parallel>, #tpu.dimension_semantics<arbitrary>], iteration_bounds = array<i64: 1, 1>, scalar_prefetch = 0 : i64, scratch_operands = 1 : i64, tpu.core_type = #tpu.core_type<tc>, window_params = [{transform_indices = @transform_0, window_bounds = array<i64: 8, 256>}, {transform_indices = @transform_1, window_bounds = array<i64: 256, 128>}, {pipeline_mode = #tpu.pipeline_mode<synchronous>, transform_indices = @transform_2, window_bounds = array<i64: 1, 128>}, {transform_indices = @transform_3, window_bounds = array<i64: 8, 128>}]} {
    %c0_i32 = arith.constant 0 : i32
    %0 = arith.cmpi eq, %arg1, %c0_i32 : i32
    %1 = arith.extui %0 : i1 to i32
    %c0_i32_0 = arith.constant 0 : i32
    %2 = arith.cmpi ne, %1, %c0_i32_0 : i32
    scf.if %2 {
      %cst_10 = arith.constant 0.000000e+00 : f32
      %12 = vector.broadcast %cst_10 : f32 to vector<8x128xf32>
      %c0_11 = arith.constant 0 : index
      %c0_12 = arith.constant 0 : index
      %13 = vector.load %arg6[%c0_11, %c0_12] : memref<8x128xf32, #tpu.memory_space<vmem>>, vector<8x128xf32>
      tpu.vector_store %arg6[%c0_11, %c0_12], %12 {strides = array<i32>} : memref<8x128xf32, #tpu.memory_space<vmem>>, vector<8x128xf32>,
    } else {
    }
    %c0 = arith.constant 0 : index
    %c0_1 = arith.constant 0 : index
    %3 = vector.load %arg6[%c0, %c0_1] : memref<8x128xf32, #tpu.memory_space<vmem>>, vector<8x128xf32>
    %c0_2 = arith.constant 0 : index
    %c0_3 = arith.constant 0 : index
    %4 = vector.load %arg2[%c0_2, %c0_3] : memref<8x256xf32, #tpu.memory_space<vmem>>, vector<8x256xf32>
    %c0_4 = arith.constant 0 : index
    %c0_5 = arith.constant 0 : index
    %5 = vector.load %arg3[%c0_4, %c0_5] : memref<256x128xf32, #tpu.memory_space<vmem>>, vector<256x128xf32>
    %cst = arith.constant dense<0.000000e+00> : vector<8x128xf32>
    %6 = tpu.matmul %4, %5, %cst {dimension_numbers = #tpu.dot_dimension_numbers<[1], [0], [0], [1], [0, 0, 1, 1], [], []>} : vector<8x256xf32>, vector<256x128xf32>, vector<8x128xf32> -> vector<8x128xf32>
    %7 = arith.addf %3, %6 : vector<8x128xf32>
    %c0_6 = arith.constant 0 : index
    %c0_7 = arith.constant 0 : index
    %8 = vector.load %arg6[%c0_6, %c0_7] : memref<8x128xf32, #tpu.memory_space<vmem>>, vector<8x128xf32>
    tpu.vector_store %arg6[%c0_6, %c0_7], %7 {strides = array<i32>} : memref<8x128xf32, #tpu.memory_space<vmem>>, vector<8x128xf32>,
    %c0_i32_8 = arith.constant 0 : i32
    %9 = arith.cmpi eq, %arg1, %c0_i32_8 : i32
    %10 = arith.extui %9 : i1 to i32
    %c0_i32_9 = arith.constant 0 : i32
    %11 = arith.cmpi ne, %10, %c0_i32_9 : i32
    scf.if %11 {
      %c0_10 = arith.constant 0 : index
      %c0_11 = arith.constant 0 : index
      %12 = vector.load %arg6[%c0_10, %c0_11] : memref<8x128xf32, #tpu.memory_space<vmem>>, vector<8x128xf32>
      %c0_12 = arith.constant 0 : index
      %c0_13 = arith.constant 0 : index
      %13 = vector.load %arg4[%c0_12, %c0_13] : memref<1x128xf32, #tpu.memory_space<vmem>>, vector<1x128xf32>
      %14 = vector.broadcast %13 : vector<1x128xf32> to vector<8x128xf32>
      %15 = arith.addf %12, %14 : vector<8x128xf32>
      %c0_14 = arith.constant 0 : index
      %c0_15 = arith.constant 0 : index
      %16 = vector.load %arg5[%c0_14, %c0_15] : memref<8x128xf32, #tpu.memory_space<vmem>>, vector<8x128xf32>
      tpu.vector_store %arg5[%c0_14, %c0_15], %15 {strides = array<i32>} : memref<8x128xf32, #tpu.memory_space<vmem>>, vector<8x128xf32>,
    } else {
    }
    return
  }
  func.func @transform_0(%arg0: i32, %arg1: i32) -> (i32, i32) {
    %c0_i32 = arith.constant 0 : i32
    return %arg0, %arg1 : i32, i32
  }
  func.func @transform_1(%arg0: i32, %arg1: i32) -> (i32, i32) {
    %c0_i32 = arith.constant 0 : i32
    %c0_i32_0 = arith.constant 0 : i32
    return %arg1, %c0_i32 : i32, i32
  }
  func.func @transform_2(%arg0: i32, %arg1: i32) -> (i32, i32) {
    %c0_i32 = arith.constant 0 : i32
    %c0_i32_0 = arith.constant 0 : i32
    %c0_i32_1 = arith.constant 0 : i32
    return %c0_i32, %c0_i32_0 : i32, i32
  }
  func.func @transform_3(%arg0: i32, %arg1: i32) -> (i32, i32) {
    %c0_i32 = arith.constant 0 : i32
    %c0_i32_0 = arith.constant 0 : i32
    return %arg0, %c0_i32 : i32, i32
  }
}

</mosaic_0001>

<llo_original>
// kernel: simple_linear_forward.1
$region0: #{simple_linear_forward.1}
  #allocation0 [shape = 'u32[]', space=smem, size = 0x4, offset = 0x4, fixed_abs, tag = 'smem constant byte address 0x4 - core index']
  #allocation1 [shape = 'u32[72,128]{1,0:T(1,128)}', space=vmem, size = 0x9000, scoped, tag = 'internal scratch']
  #allocation2 [shape = 'f32[8,128]{1,0:T(8,128)}', space=vmem, size = 0x1000, scoped, tag = 'scratch operand']
  %s0 = inlined_call_operand.vmem [shape: f32[2,256], index: 0, kind: input, shape index: {}]
  %s1 = inlined_call_operand.hbm [shape: f32[256,128], index: 1, kind: input, shape index: {}]
  %s2 = inlined_call_operand.vmem [shape: f32[1,128], index: 2, kind: input, shape index: {}]
  %s3 = inlined_call_operand.hbm [shape: f32[2,128], index: 3, kind: output, shape index: {}]
  %s4 = sld [smem:[#allocation0]]
  $region34: #{simple_linear_forward.1} parent=0
    _
  %s6 = ssub.s32 1, %s4
  %s7 = scalar_select 0, %s6, %s4
  $region1: #{simple_linear_forward.1} parent=0
    #allocation3 [shape = 'u8[131072]{0}', space=vmem, size = 0x20000, scoped, tag = 'input window, operand 1, single buffered']
    #allocation4 [shape = 's32[1]{0}', space=sflag, size = 0x4, scoped, tag = 'scoped memory for simple_linear_forward.1']
    #allocation5 [shape = 's32[1]{0}', space=sflag, size = 0x4, scoped, tag = 'scoped memory for simple_linear_forward.1']
    #allocation6 [shape = 'u8[4096]{0}', space=vmem, size = 0x1000, scoped, tag = 'output window, operand 0, single buffered']
    %8 = vsyncpa [#allocation4], 0
    %9 = vsyncpa [#allocation5], 0
    // Predicated region
    $region2: #{simple_linear_forward.1} parent=1 // pred_check
      _
    $region3: #{simple_linear_forward.1} parent=1 // pred_check_branch
      %11 = sbr.rel (0) target = $region5
    $region4: #{simple_linear_forward.1} parent=1 // pred_region
      _
    $region5: #{simple_linear_forward.1} parent=1 // pred_fallthru
      _
    // Predicated region
    $region6: #{simple_linear_forward.1} parent=1 // pred_check
      _
    $region7: #{simple_linear_forward.1} parent=1 // pred_check_branch
      %13 = sbr.rel (0) target = $region9
    $region8: #{simple_linear_forward.1} parent=1 // pred_region
      %15 = vsyncadd [#allocation4], 0
      %s16 = sshll.u32 %s1, 4
      %s17 = int_to_ptr.hbm [resolvable:$true] %s16
      %s18 = sshll.u32 [#allocation3], 4
      %s19 = int_to_ptr.vmem [resolvable:$true] %s18
      %24 = dma.hbm_to_vmem [thread:$0]  %s17, 4096, %s19, [#allocation4], 128, 128, 8
    $region9: #{simple_linear_forward.1} parent=1 // pred_fallthru
      _
    // Predicated region
    $region10: #{simple_linear_forward.1} parent=1 // pred_check
      _
    $region11: #{simple_linear_forward.1} parent=1 // pred_check_branch
      %26 = sbr.rel (0) target = $region13
    $region12: #{simple_linear_forward.1} parent=1 // pred_region
      _
    $region13: #{simple_linear_forward.1} parent=1 // pred_fallthru
      _
    // Predicated region
    $region14: #{simple_linear_forward.1} parent=1 // pred_check
      _
    $region15: #{simple_linear_forward.1} parent=1 // pred_check_branch
      %28 = sbr.rel (0) target = $region17
    $region16: #{simple_linear_forward.1} parent=1 // pred_region
      %30 = dma.done [#allocation4], 4096
    $region17: #{simple_linear_forward.1} parent=1 // pred_fallthru
      _
    %p31 = scmp.eq.s32.totalorder 0, 0
    // Predicated region
    $region18: #{simple_linear_forward.1} parent=1 // pred_check
      %p32 = pneg %p31
    $region19: #{simple_linear_forward.1} parent=1 // pred_check_branch
      %34 = sbr.rel (%p32) target = $region21
    $region20: #{simple_linear_forward.1} parent=1 // pred_region
      %35 = vst [vmem:[#allocation2] sm:$0xff] 0.0
    $region21: #{simple_linear_forward.1} parent=1 // pred_fallthru
      _
    %v36 = vld [vmem:[#allocation2] sm:$0xff]
    %v37 = vld [vmem:[%s0] sm:$0xf]
    %v38 = vld [vmem:[%s0 + $0x4] sm:$0xf]
    %v39 = vld [vmem:[%s0 + $0x8] sm:$0xf]
    %v40 = vld [vmem:[%s0 + $0xc] sm:$0xf]
    %v41 = vld [vmem:[#allocation3] sm:$0xff]
    %v42 = vld [vmem:[#allocation3 + $0x8] sm:$0xff]
    %v43 = vld [vmem:[#allocation3 + $0x10] sm:$0xff]
    %v44 = vld [vmem:[#allocation3 + $0x18] sm:$0xff]
    %v45 = vld [vmem:[#allocation3 + $0x20] sm:$0xff]
    %v46 = vld [vmem:[#allocation3 + $0x28] sm:$0xff]
    %v47 = vld [vmem:[#allocation3 + $0x30] sm:$0xff]
    %v48 = vld [vmem:[#allocation3 + $0x38] sm:$0xff]
    %v49 = vld [vmem:[#allocation3 + $0x40] sm:$0xff]
    %v50 = vld [vmem:[#allocation3 + $0x48] sm:$0xff]
    %v51 = vld [vmem:[#allocation3 + $0x50] sm:$0xff]
    %v52 = vld [vmem:[#allocation3 + $0x58] sm:$0xff]
    %v53 = vld [vmem:[#allocation3 + $0x60] sm:$0xff]
    %v54 = vld [vmem:[#allocation3 + $0x68] sm:$0xff]
    %v55 = vld [vmem:[#allocation3 + $0x70] sm:$0xff]
    %v56 = vld [vmem:[#allocation3 + $0x78] sm:$0xff]
    %v57 = vld [vmem:[#allocation3 + $0x80] sm:$0xff]
    %v58 = vld [vmem:[#allocation3 + $0x88] sm:$0xff]
    %v59 = vld [vmem:[#allocation3 + $0x90] sm:$0xff]
    %v60 = vld [vmem:[#allocation3 + $0x98] sm:$0xff]
    %v61 = vld [vmem:[#allocation3 + $0xa0] sm:$0xff]
    %v62 = vld [vmem:[#allocation3 + $0xa8] sm:$0xff]
    %v63 = vld [vmem:[#allocation3 + $0xb0] sm:$0xff]
    %v64 = vld [vmem:[#allocation3 + $0xb8] sm:$0xff]
    %v65 = vld [vmem:[#allocation3 + $0xc0] sm:$0xff]
    %v66 = vld [vmem:[#allocation3 + $0xc8] sm:$0xff]
    %v67 = vld [vmem:[#allocation3 + $0xd0] sm:$0xff]
    %v68 = vld [vmem:[#allocation3 + $0xd8] sm:$0xff]
    %v69 = vld [vmem:[#allocation3 + $0xe0] sm:$0xff]
    %v70 = vld [vmem:[#allocation3 + $0xe8] sm:$0xff]
    %v71 = vld [vmem:[#allocation3 + $0xf0] sm:$0xff]
    %v72 = vld [vmem:[#allocation3 + $0xf8] sm:$0xff]
    %77 = vst [vmem:[#allocation1] ss:$4 sm:$0xff] %v37
    %s78 = scalar_lea.vmem [#allocation1], 1
    %79 = vst [vmem:[%s78] ss:$4 sm:$0xff] %v38
    %s80 = scalar_lea.vmem [#allocation1], 2
    %81 = vst [vmem:[%s80] ss:$4 sm:$0xff] %v39
    %s82 = scalar_lea.vmem [#allocation1], 3
    %83 = vst [vmem:[%s82] ss:$4 sm:$0xff] %v40
    %v84 = vld.sshfl [vmem:[#allocation1] sm:$0xff pattern:$0x73625140]
    %v85 = vld.sshfl [vmem:[#allocation1 + $0x8] sm:$0xff pattern:$0x73625140]
    %88 = vmatpush.msra.mxu0 %v56
    %89 = vmatpush.msra.mxu0 %v55
    %90 = vmatpush.msra.mxu0 %v54
    %91 = vmatpush.msra.mxu0 %v53
    %92 = vmatpush.msra.mxu0 %v52
    %93 = vmatpush.msra.mxu0 %v51
    %94 = vmatpush.msra.mxu0 %v50
    %95 = vmatpush.msra.mxu0 %v49
    %96 = vmatpush.msra.mxu0 %v48
    %97 = vmatpush.msra.mxu0 %v47
    %98 = vmatpush.msra.mxu0 %v46
    %99 = vmatpush.msra.mxu0 %v45
    %100 = vmatpush.msra.mxu0 %v44
    %101 = vmatpush.msra.mxu0 %v43
    %102 = vmatpush.msra.mxu0 %v42
    %103 = vmatpush.msra.mxu0 %v41
    %104 = vmatmul.f32.gmra.mxu0 %v84
    %v105 = vpop.f32.mrf.mxu0
    %v106 = vadd.f32 0.0, %v105
    %107 = vdwg.mxu0
    %108 = vmatpush.msra.mxu0 %v72
    %109 = vmatpush.msra.mxu0 %v71
    %110 = vmatpush.msra.mxu0 %v70
    %111 = vmatpush.msra.mxu0 %v69
    %112 = vmatpush.msra.mxu0 %v68
    %113 = vmatpush.msra.mxu0 %v67
    %114 = vmatpush.msra.mxu0 %v66
    %115 = vmatpush.msra.mxu0 %v65
    %116 = vmatpush.msra.mxu0 %v64
    %117 = vmatpush.msra.mxu0 %v63
    %118 = vmatpush.msra.mxu0 %v62
    %119 = vmatpush.msra.mxu0 %v61
    %120 = vmatpush.msra.mxu0 %v60
    %121 = vmatpush.msra.mxu0 %v59
    %122 = vmatpush.msra.mxu0 %v58
    %123 = vmatpush.msra.mxu0 %v57
    %124 = vmatmul.f32.gmra.mxu0 %v85
    %v125 = vpop.f32.mrf.mxu0
    %v126 = vadd.f32 %v106, %v125
    %127 = vdwg.mxu0
    %v128 = vadd.f32 %v36, %v126
    %129 = vst [vmem:[#allocation2] sm:$0xff] %v128
    // Predicated region
    $region22: #{simple_linear_forward.1} parent=1 // pred_check
      %p130 = pneg %p31
    $region23: #{simple_linear_forward.1} parent=1 // pred_check_branch
      %132 = sbr.rel (%p130) target = $region25
    $region24: #{simple_linear_forward.1} parent=1 // pred_region
      %v133 = vld [vmem:[#allocation2] sm:$0xff]
      %v134 = vld [vmem:[%s2] sm:$0x1]
      %v136 = vperm.slane %v134, 0
      %v138 = vadd.f32 %v133, %v136
      %139 = vst [vmem:[#allocation6] sm:$0xff] %v138
    $region25: #{simple_linear_forward.1} parent=1 // pred_fallthru
      _
    // Predicated region
    $region26: #{simple_linear_forward.1} parent=1 // pred_check
      _
    $region27: #{simple_linear_forward.1} parent=1 // pred_check_branch
      %141 = sbr.rel (0) target = $region29
    $region28: #{simple_linear_forward.1} parent=1 // pred_region
      %143 = vsyncadd [#allocation5], 96
      %s144 = sshll.u32 [#allocation6], 4
      %s145 = int_to_ptr.vmem [resolvable:$true] %s144
      %s146 = sshll.u32 %s3, 4
      %s147 = int_to_ptr.hbm [resolvable:$true] %s146
      %152 = dma.vmem_to_hbm [thread:$0]  %s145, 32, %s147, [#allocation5], 32, 32, 2
    $region29: #{simple_linear_forward.1} parent=1 // pred_fallthru
      _
    // Predicated region
    $region30: #{simple_linear_forward.1} parent=1 // pred_check
      _
    $region31: #{simple_linear_forward.1} parent=1 // pred_check_branch
      %154 = sbr.rel (0) target = $region33
    $region32: #{simple_linear_forward.1} parent=1 // pred_region
      %156 = dma.done [#allocation5], 128
    $region33: #{simple_linear_forward.1} parent=1 // pred_fallthru
      _
    %157 = vsyncpa [#allocation4], 1
    %158 = vsyncpa [#allocation5], 1

</llo_original>
